<compile_context>
chip_gen: v6e
topology: v6e:2x2x1
jax: 0.10.0
libtpu: 0.0.40
codegen_flags: <defaults>
</compile_context>

<pallas_src>
import numpy as np
import jax
import jax.numpy as jnp
from jax.experimental import pallas as pl
from jax.experimental.pallas import tpu as pltpu


# ----------------------------------------------------------------------------
# Kernels
# ----------------------------------------------------------------------------

def _concat_copy_kernel(*refs):
    """Fused row-tiled copy: each input block -> its static column slab of the
    output block.  Dtype promotion is fused into the store (VPU is free here,
    the kernel is DMA-bound)."""
    out_ref = refs[-1]
    in_refs = refs[:-1]
    off = 0
    for r in in_refs:
        c = r.shape[-1]
        # NOTE: `off` may be lane-unaligned (not a multiple of 128); the
        # resulting masked stores are hidden under the HBM writeback DMA.
        out_ref[:, off:off + c] = r[...].astype(out_ref.dtype)
        off += c


def _concat_dma_kernel(*refs):
    """Degenerate-shape fallback: direct HBM->HBM DMA of each input slab into
    its column slab of the output (no VMEM round trip).  Handles pre==1 /
    tiny-row (dim-0 style) concats and rows too wide for any VMEM tile."""
    sem = refs[-1]
    out_ref = refs[-2]
    in_refs = refs[:-2]
    copies = []
    off = 0
    for i, r in enumerate(in_refs):
        c = r.shape[-1]
        cp = pltpu.make_async_copy(r, out_ref.at[:, off:off + c], sem.at[i])
        cp.start()
        copies.append(cp)
        off += c
    for cp in copies:
        cp.wait()


# ----------------------------------------------------------------------------
# Tiling heuristics
# ----------------------------------------------------------------------------

def _vmem_budget_and_limit():
    """(tile-sizing byte budget, declared vmem_limit_bytes), per TPU gen."""
    cap = 64 * 1024 * 1024
    try:
        info = pltpu.get_tpu_info()
        cap = int(getattr(info, "vmem_capacity_bytes", cap))
    except Exception:
        pass
    if cap >= 100 * 1024 * 1024:            # v5e / v6e: 128 MiB physical VMEM
        return 40 * 1024 * 1024, 64 * 1024 * 1024
    # v7x (64 MiB physical) or unknown: stay conservative
    return 20 * 1024 * 1024, 32 * 1024 * 1024


def _pick_block_rows(R, row_bytes, sub, budget):
    """Largest sublane-packed row tile that fits the double-buffered budget,
    while guaranteeing >= 2 grid steps (so both v7x TCs get work)."""
    if R <= sub:
        return R
    max_rows = max(sub, budget // max(1, 2 * row_bytes))   # 2x: double-buffer
    half = max(sub, (((R + 1) // 2) // sub) * sub)          # force >= 2 steps
    block_rows = min(R, max_rows, half)
    block_rows = max(sub, (block_rows // sub) * sub)
    return block_rows


# ----------------------------------------------------------------------------
# pallas_call wrappers
# ----------------------------------------------------------------------------

def _concat2d_fused(xs2d, C_total, out_dtype, block_rows, vmem_limit):
    R = int(xs2d[0].shape[0])
    grid = (pl.cdiv(R, block_rows),)
    in_specs = [pl.BlockSpec((block_rows, int(x.shape[1])), lambda i: (i, 0))
                for x in xs2d]
    out_spec = pl.BlockSpec((block_rows, C_total), lambda i: (i, 0))
    return pl.pallas_call(
        _concat_copy_kernel,
        grid=grid,
        in_specs=in_specs,
        out_specs=out_spec,
        out_shape=jax.ShapeDtypeStruct((R, C_total), out_dtype),
        compiler_params=pltpu.CompilerParams(
            dimension_semantics=("parallel",),
            vmem_limit_bytes=vmem_limit,
        ),
    )(*xs2d)


def _concat2d_dma(xs2d, C_total, out_dtype):
    # DMA cannot cast, so promote (rare mixed-dtype case on this path) first.
    xs2d = [x.astype(out_dtype) for x in xs2d]
    R = int(xs2d[0].shape[0])
    n = len(xs2d)
    return pl.pallas_call(
        _concat_dma_kernel,
        in_specs=[pl.BlockSpec(memory_space=pl.ANY)] * n,
        out_specs=pl.BlockSpec(memory_space=pl.ANY),
        out_shape=jax.ShapeDtypeStruct((R, C_total), out_dtype),
        scratch_shapes=[pltpu.SemaphoreType.DMA((n,))],
    )(*xs2d)


# ----------------------------------------------------------------------------
# Public API
# ----------------------------------------------------------------------------

def concat(xs, dim):
    """torch.cat(xs, dim) implemented with Pallas copy kernels."""
    xs = [jnp.asarray(x) for x in xs]
    assert len(xs) >= 1, "concat needs at least one input"
    ndim = xs[0].ndim
    d = dim if dim >= 0 else dim + ndim
    assert 0 <= d < ndim, f"invalid concat dim {dim} for ndim {ndim}"

    # torch.cat type promotion (approximated with jnp.result_type)
    out_dtype = jnp.result_type(*[x.dtype for x in xs])

    out_shape = list(xs[0].shape)
    out_shape[d] = sum(int(x.shape[d]) for x in xs)
    out_shape = tuple(out_shape)

    pre = int(np.prod(xs[0].shape[:d], dtype=np.int64))
    post = int(np.prod(xs[0].shape[d + 1:], dtype=np.int64))

    xs_nz = [x for x in xs if int(x.shape[d]) > 0]
    if pre == 0 or post == 0 or not xs_nz:
        return jnp.zeros(out_shape, out_dtype)
    if len(xs_nz) == 1:
        return xs_nz[0].astype(out_dtype).reshape(out_shape)

    # Flatten each input to (pre, d_i * post): concat becomes a column concat.
    xs2d = [x.reshape(pre, int(x.shape[d]) * post) for x in xs_nz]
    C_total = sum(int(x.shape[1]) for x in xs2d)

    out_itemsize = int(jnp.dtype(out_dtype).itemsize)
    min_itemsize = min([int(jnp.dtype(x.dtype).itemsize) for x in xs2d]
                       + [out_itemsize])
    sub = 8 * max(1, 4 // min_itemsize)      # sublane packing: 8 / 16 / 32 rows

    budget, vmem_limit = _vmem_budget_and_limit()
    row_bytes = (sum(int(x.shape[1]) * int(jnp.dtype(x.dtype).itemsize)
                     for x in xs2d)
                 + C_total * out_itemsize)

    if pre < sub or 2 * sub * row_bytes > budget:
        # Degenerate tiling (dim-0 style concat, or rows too wide for VMEM):
        # direct HBM->HBM DMA per input, no VMEM staging.
        out2d = _concat2d_dma(xs2d, C_total, out_dtype)
    else:
        block_rows = _pick_block_rows(pre, row_bytes, sub, budget)
        out2d = _concat2d_fused(xs2d, C_total, out_dtype, block_rows, vmem_limit)
    return out2d.reshape(out_shape)


class ConcatPallas:
    """Pallas port of the PyTorch `Concat` module."""

    def __init__(self, dim):
        self.dim = dim

    def __call__(self, x):
        return self.forward(x)

    def forward(self, x):
        return concat(list(x), self.dim)


# ----------------------------------------------------------------------------
# Self-test
# ----------------------------------------------------------------------------

if __name__ == "__main__":
    key = jax.random.PRNGKey(0)
    k1, k2, k3, k4, k5, k6, k7 = jax.random.split(key, 7)

    ok = True

    # 1) channel-dim concat (dim=1), NCHW-style (pre=2 -> DMA fallback path)
    a = jax.random.normal(k1, (2, 4, 16, 16), dtype=jnp.float32)
    b = jax.random.normal(k2, (2, 6, 16, 16), dtype=jnp.float32)
    c = jax.random.normal(k3, (2, 2, 16, 16), dtype=jnp.float32)
    out1 = ConcatPallas(dim=1)([a, b, c])
    jax.block_until_ready(out1)
    ref1 = jnp.concatenate([a, b, c], axis=1)
    ok &= out1.shape == ref1.shape and np.array_equal(np.asarray(out1), np.asarray(ref1))

    # 2) last-dim concat (dim=-1), seq/hidden style (fused path, 1 grid step)
    d = jax.random.normal(k4, (8, 32), dtype=jnp.float32)
    e = jax.random.normal(k5, (8, 96), dtype=jnp.float32)
    out2 = ConcatPallas(dim=-1)([d, e])
    jax.block_until_ready(out2)
    ref2 = jnp.concatenate([d, e], axis=-1)
    ok &= out2.shape == ref2.shape and np.array_equal(np.asarray(out2), np.asarray(ref2))

    # 3) leading-dim concat (dim=0, pre==1 -> HBM->HBM DMA path)
    f = jax.random.normal(k6, (4, 8, 16), dtype=jnp.float32)
    g = jax.random.normal(k7, (3, 8, 16), dtype=jnp.float32)
    out3 = ConcatPallas(dim=0)([f, g])
    jax.block_until_ready(out3)
    ref3 = jnp.concatenate([f, g], axis=0)
    ok &= out3.shape == ref3.shape and np.array_equal(np.asarray(out3), np.asarray(ref3))

    # 4) fused path with >= 2 grid steps (exercises row tiling / megacore split)
    h = jax.random.normal(k1, (64, 128), dtype=jnp.float32)
    i_ = jax.random.normal(k2, (64, 256), dtype=jnp.float32)
    out4 = ConcatPallas(dim=1)([h, i_])
    jax.block_until_ready(out4)
    ref4 = jnp.concatenate([h, i_], axis=1)
    ok &= out4.shape == ref4.shape and np.array_equal(np.asarray(out4), np.asarray(ref4))

    # 5) mixed dtypes (bf16 + f32) -> promotion fused into the kernel store
    p = jax.random.normal(k3, (16, 64), dtype=jnp.bfloat16)
    q = jax.random.normal(k4, (16, 64), dtype=jnp.float32)
    out5 = ConcatPallas(dim=1)([p, q])
    jax.block_until_ready(out5)
    ref5 = jnp.concatenate([p.astype(jnp.float32), q], axis=1)
    ok &= (out5.dtype == ref5.dtype and out5.shape == ref5.shape
           and np.array_equal(np.asarray(out5), np.asarray(ref5)))

    if not ok:
        raise SystemExit("MISMATCH")
    print("KERNEL_OK")
</pallas_src>

<mosaic_0001>
module attributes {stable_mosaic.version = 11 : i64} {
  func.func @_concat_dma_kernel(%arg0: memref<2x1024xf32, #tpu.memory_space<any>>, %arg1: memref<2x1536xf32, #tpu.memory_space<any>>, %arg2: memref<2x512xf32, #tpu.memory_space<any>>, %arg3: memref<2x3072xf32, #tpu.memory_space<any>>, %arg4: memref<3x!tpu.dma_semaphore, #tpu.memory_space<semaphore_mem>>) attributes {dimension_semantics = [], scalar_prefetch = 0 : i64, scratch_operands = 1 : i64, tpu.core_type = #tpu.core_type<tc>} {
    %c0_i32 = arith.constant 0 : i32
    %c0_i32_0 = arith.constant 0 : i32
    %c0_i32_1 = arith.constant 0 : i32
    %0 = tpu.memref_slice %arg3[%c0_i32_0, %c0_i32_1] : memref<2x3072xf32, #tpu.memory_space<any>> -> memref<2x1024xf32, #tpu.memory_space<any>>
    %1 = tpu.memref_slice %arg4[%c0_i32] : memref<3x!tpu.dma_semaphore, #tpu.memory_space<semaphore_mem>> -> memref<1x!tpu.dma_semaphore, #tpu.memory_space<semaphore_mem>>
    %2 = tpu.memref_squeeze %1 : memref<1x!tpu.dma_semaphore, #tpu.memory_space<semaphore_mem>> -> memref<!tpu.dma_semaphore, #tpu.memory_space<semaphore_mem>>
    tpu.enqueue_dma source(%arg0 : memref<2x1024xf32, #tpu.memory_space<any>>) target(%0 : memref<2x1024xf32, #tpu.memory_space<any>>) target_semaphore(%2 : memref<!tpu.dma_semaphore, #tpu.memory_space<semaphore_mem>>)
    %c1_i32 = arith.constant 1 : i32
    %c0_i32_2 = arith.constant 0 : i32
    %c1024_i32 = arith.constant 1024 : i32
    %3 = tpu.memref_slice %arg3[%c0_i32_2, %c1024_i32] : memref<2x3072xf32, #tpu.memory_space<any>> -> memref<2x1536xf32, #tpu.memory_space<any>>
    %4 = tpu.memref_slice %arg4[%c1_i32] : memref<3x!tpu.dma_semaphore, #tpu.memory_space<semaphore_mem>> -> memref<1x!tpu.dma_semaphore, #tpu.memory_space<semaphore_mem>>
    %5 = tpu.memref_squeeze %4 : memref<1x!tpu.dma_semaphore, #tpu.memory_space<semaphore_mem>> -> memref<!tpu.dma_semaphore, #tpu.memory_space<semaphore_mem>>
    tpu.enqueue_dma source(%arg1 : memref<2x1536xf32, #tpu.memory_space<any>>) target(%3 : memref<2x1536xf32, #tpu.memory_space<any>>) target_semaphore(%5 : memref<!tpu.dma_semaphore, #tpu.memory_space<semaphore_mem>>)
    %c2_i32 = arith.constant 2 : i32
    %c0_i32_3 = arith.constant 0 : i32
    %c2560_i32 = arith.constant 2560 : i32
    %6 = tpu.memref_slice %arg3[%c0_i32_3, %c2560_i32] : memref<2x3072xf32, #tpu.memory_space<any>> -> memref<2x512xf32, #tpu.memory_space<any>>
    %7 = tpu.memref_slice %arg4[%c2_i32] : memref<3x!tpu.dma_semaphore, #tpu.memory_space<semaphore_mem>> -> memref<1x!tpu.dma_semaphore, #tpu.memory_space<semaphore_mem>>
    %8 = tpu.memref_squeeze %7 : memref<1x!tpu.dma_semaphore, #tpu.memory_space<semaphore_mem>> -> memref<!tpu.dma_semaphore, #tpu.memory_space<semaphore_mem>>
    tpu.enqueue_dma source(%arg2 : memref<2x512xf32, #tpu.memory_space<any>>) target(%6 : memref<2x512xf32, #tpu.memory_space<any>>) target_semaphore(%8 : memref<!tpu.dma_semaphore, #tpu.memory_space<semaphore_mem>>)
    %c0_i32_4 = arith.constant 0 : i32
    %c0_i32_5 = arith.constant 0 : i32
    %c0_i32_6 = arith.constant 0 : i32
    %9 = tpu.memref_slice %arg3[%c0_i32_5, %c0_i32_6] : memref<2x3072xf32, #tpu.memory_space<any>> -> memref<2x1024xf32, #tpu.memory_space<any>>
    %10 = tpu.memref_slice %arg4[%c0_i32_4] : memref<3x!tpu.dma_semaphore, #tpu.memory_space<semaphore_mem>> -> memref<1x!tpu.dma_semaphore, #tpu.memory_space<semaphore_mem>>
    %11 = tpu.memref_squeeze %10 : memref<1x!tpu.dma_semaphore, #tpu.memory_space<semaphore_mem>> -> memref<!tpu.dma_semaphore, #tpu.memory_space<semaphore_mem>>
    tpu.wait_dma2 semaphore(%11 : memref<!tpu.dma_semaphore, #tpu.memory_space<semaphore_mem>>) src(%arg0 : memref<2x1024xf32, #tpu.memory_space<any>>) dst(%9 : memref<2x1024xf32, #tpu.memory_space<any>>)
    %c1_i32_7 = arith.constant 1 : i32
    %c0_i32_8 = arith.constant 0 : i32
    %c1024_i32_9 = arith.constant 1024 : i32
    %12 = tpu.memref_slice %arg3[%c0_i32_8, %c1024_i32_9] : memref<2x3072xf32, #tpu.memory_space<any>> -> memref<2x1536xf32, #tpu.memory_space<any>>
    %13 = tpu.memref_slice %arg4[%c1_i32_7] : memref<3x!tpu.dma_semaphore, #tpu.memory_space<semaphore_mem>> -> memref<1x!tpu.dma_semaphore, #tpu.memory_space<semaphore_mem>>
    %14 = tpu.memref_squeeze %13 : memref<1x!tpu.dma_semaphore, #tpu.memory_space<semaphore_mem>> -> memref<!tpu.dma_semaphore, #tpu.memory_space<semaphore_mem>>
    tpu.wait_dma2 semaphore(%14 : memref<!tpu.dma_semaphore, #tpu.memory_space<semaphore_mem>>) src(%arg1 : memref<2x1536xf32, #tpu.memory_space<any>>) dst(%12 : memref<2x1536xf32, #tpu.memory_space<any>>)
    %c2_i32_10 = arith.constant 2 : i32
    %c0_i32_11 = arith.constant 0 : i32
    %c2560_i32_12 = arith.constant 2560 : i32
    %15 = tpu.memref_slice %arg3[%c0_i32_11, %c2560_i32_12] : memref<2x3072xf32, #tpu.memory_space<any>> -> memref<2x512xf32, #tpu.memory_space<any>>
    %16 = tpu.memref_slice %arg4[%c2_i32_10] : memref<3x!tpu.dma_semaphore, #tpu.memory_space<semaphore_mem>> -> memref<1x!tpu.dma_semaphore, #tpu.memory_space<semaphore_mem>>
    %17 = tpu.memref_squeeze %16 : memref<1x!tpu.dma_semaphore, #tpu.memory_space<semaphore_mem>> -> memref<!tpu.dma_semaphore, #tpu.memory_space<semaphore_mem>>
    tpu.wait_dma2 semaphore(%17 : memref<!tpu.dma_semaphore, #tpu.memory_space<semaphore_mem>>) src(%arg2 : memref<2x512xf32, #tpu.memory_space<any>>) dst(%15 : memref<2x512xf32, #tpu.memory_space<any>>)
    return
  }
}

</mosaic_0001>

<llo_original>
// kernel: tpu_custom_call.1
$region0: #{tpu_custom_call.1}
  #allocation0 [shape = 'u32[]', space=smem, size = 0x4, offset = 0x4, fixed_abs, tag = 'smem constant byte address 0x4 - core index']
  #allocation1 [shape = 'u32[144,128]{1,0:T(1,128)}', space=vmem, size = 0x12000, scoped, tag = 'internal scratch']
  #allocation2 [shape = 's32[3]{0}', space=sflag, size = 0xc, scoped, tag = 'scratch operand']
  #allocation3 [shape = 's32[]', space=sflag, size = 0x4, offset = 0, fixed_abs, tag = 'sflag constant byte address 0x0 - dummy sync flag']
  #allocation4 [shape = 'u32[0]{0}', space=smem, size = 0, offset = 0, fixed_abs, tag = 'smem constant byte address 0x0 - null']
  #allocation5 [shape = 's32[]', space=sflag, size = 0x4, offset = 0, fixed_abs, tag = 'sflag constant byte address 0x0 - dummy sync flag']
  #allocation6 [shape = 'u32[0]{0}', space=smem, size = 0, offset = 0, fixed_abs, tag = 'smem constant byte address 0x0 - null']
  #allocation7 [shape = 's32[]', space=sflag, size = 0x4, offset = 0, fixed_abs, tag = 'sflag constant byte address 0x0 - dummy sync flag']
  #allocation8 [shape = 'u32[0]{0}', space=smem, size = 0, offset = 0, fixed_abs, tag = 'smem constant byte address 0x0 - null']
  %s0 = inlined_call_operand.hbm [shape: f32[2,1024], index: 0, kind: input, shape index: {}]
  %s1 = inlined_call_operand.hbm [shape: f32[2,1536], index: 1, kind: input, shape index: {}]
  %s2 = inlined_call_operand.hbm [shape: f32[2,512], index: 2, kind: input, shape index: {}]
  %s3 = inlined_call_operand.hbm [shape: f32[2,3072], index: 3, kind: output, shape index: {}]
  %s4 = sld [smem:[#allocation0]]
  $region2: #{tpu_custom_call.1} parent=0
    _
  %s6 = ssub.s32 1, %s4
  %s7 = scalar_select 0, %s6, %s4
  %s9 = sshll.u32 1, 14
  %s10 = sxor.u32 4294967295, %s9
  %14 = dma.general %s0, 256, %s3, [#allocation2], 131072, [#allocation4], 0, 0
  %s15 = scalar_lea.hbm %s3, 256
  %s16 = scalar_lea.sflag [#allocation2], 1
  %s18 = sshll.u32 1, 14
  %s19 = sxor.u32 4294967295, %s18
  %23 = dma.general %s1, 384, %s15, %s16, 131072, [#allocation6], 0, 0
  %s24 = scalar_lea.hbm %s3, 640
  %s25 = scalar_lea.sflag [#allocation2], 2
  %s27 = sshll.u32 1, 14
  %s28 = sxor.u32 4294967295, %s27
  %32 = dma.general %s2, 128, %s24, %s25, 131072, [#allocation8], 0, 0
  %s33 = smul.u32 2, 1
  %s34 = smul.u32 %s33, 8
  %s35 = sshll.u32 %s34, 4
  %36 = dma.done [#allocation2], %s35
  %s37 = smul.u32 %s33, 12
  %s38 = sshll.u32 %s37, 4
  %39 = dma.done %s16, %s38
  %s40 = smul.u32 %s33, 4
  %s41 = sshll.u32 %s40, 4
  %42 = dma.done %s25, %s41
  %43 = vsyncmov [#allocation2]
  %s44 = vpop.sfrf %43
  %p45 = scmp.eq.s32.totalorder %s44, 0
  %p46 = pneg %p45
  %48 = shalt.err (%p46)
  %s49 = scalar_lea.sflag [#allocation2], 1
  %50 = vsyncmov %s49
  %s51 = vpop.sfrf %50
  %p52 = scmp.eq.s32.totalorder %s51, 0
  %p53 = pneg %p52
  %55 = shalt.err (%p53)
  %s56 = scalar_lea.sflag [#allocation2], 2
  %57 = vsyncmov %s56
  %s58 = vpop.sfrf %57
  %p59 = scmp.eq.s32.totalorder %s58, 0
  %p60 = pneg %p59
  %62 = shalt.err (%p60)

</llo_original>
